<compile_context>
chip_gen: v7x
topology: tpu7x:2x2x1
jax: 0.10.0
libtpu: 0.0.40
codegen_flags: <defaults>
</compile_context>

<pallas_src>
import numpy as np

import jax
import jax.numpy as jnp
from jax.experimental import pallas as pl
from jax.experimental.pallas import tpu as pltpu


def _conv1x1_kernel(w_ref, x_ref, o_ref):
    # w_ref : (Cw, Cw)  (block-diagonal) weight; constant block index -> DMA'd
    #                    once and resident in VMEM across the whole grid.
    # x_ref : (Cw, THW) one folded image's lane-dense spatial tile.
    # o_ref : (Cw, THW) output tile.
    o_ref[...] = jnp.dot(
        w_ref[...], x_ref[...], preferred_element_type=jnp.float32
    ).astype(o_ref.dtype)


def _ceil_to(x, m):
    return ((x + m - 1) // m) * m


def _pick_batch_fold(N, C):
    """Smallest nb with (nb*C) % 8 == 0 and nb | N; 1 if impossible."""
    if C % 8 == 0:
        return 1
    g = np.gcd(C, 8)
    nb = 8 // int(g)
    return nb if (N % nb == 0) else 1


def _pick_spatial_tile(HW, c_pad, *, target_block_bytes, footprint_budget_bytes):
    """Pick a lane-dense spatial tile (in elements) sized by bytes.

    - Aim for ~target_block_bytes per (Cpad, thw) f32 block.
    - Cap so the pipeline footprint (2 in bufs + 2 out bufs) fits the budget.
    - Full-HW blocks are always legal; otherwise use a multiple of 128,
      preferring one that divides HW exactly (no ragged last block).
    """
    bytes_per_col = 4 * c_pad  # f32, one lane-column across padded sublanes
    max_thw_budget = footprint_budget_bytes // (16 * c_pad)  # 4 bufs * 4B * c_pad
    target_thw = min(target_block_bytes // bytes_per_col, max_thw_budget)
    target_thw = max(128, target_thw)

    if HW <= target_thw:
        return HW  # full-dim block: legal regardless of 128-alignment

    thw = (target_thw // 128) * 128
    t = thw
    while t >= 128:  # prefer an exact divisor of HW (avoids masked partial stores)
        if HW % t == 0:
            return t
        t -= 128
    return thw  # ragged last block; Pallas masks it correctly


def _inverse_weight(weight):
    """Match torch.inverse(weight.double()).float()."""
    try:
        w64 = np.asarray(jax.device_get(weight), dtype=np.float64)
        return jnp.asarray(np.linalg.inv(w64).astype(np.float32))
    except Exception:
        # TODO(synk): under jit (traced weight) fall back to an f32 inverse;
        # TPU has no native f64, so the f64 host path needs a concrete array.
        return jnp.linalg.inv(weight).astype(jnp.float32)


def invertible_conv1x1(
    x_nchw,
    weight,
    is_rev=False,
    *,
    target_block_bytes=4 << 20,        # ~4 MiB per spatial block (>= roofline knee)
    footprint_budget_bytes=40 << 20,   # v7x-safe (64 MiB physical per TC)
):
    """Forward pass of InvertibleConv1x1.

    x_nchw : (N, C, H, W) float32
    weight : (C, C) float32 (the QR-orthogonal parameter)
    is_rev : Python bool; if True use inverse(weight) (computed in f64, cast f32)
    """
    w_used = _inverse_weight(weight) if is_rev else weight.astype(jnp.float32)

    N, C, H, W = x_nchw.shape
    HW = H * W

    # Batch-fold tiny channel counts into 8-sublane multiples (free reshape;
    # block-diag weight keeps per-image semantics exact).
    nb = _pick_batch_fold(N, C)
    Nb = N // nb
    Cw = nb * C
    if nb > 1:
        w_used = jnp.kron(jnp.eye(nb, dtype=w_used.dtype), w_used)

    # NCHW -> (Nb, nb*C, H*W): pure view, no transpose, no padding copy.
    x3 = x_nchw.reshape(Nb, Cw, HW)

    cw_pad = _ceil_to(Cw, 8)
    thw = _pick_spatial_tile(
        HW,
        cw_pad,
        target_block_bytes=target_block_bytes,
        footprint_budget_bytes=footprint_budget_bytes,
    )

    # Keep >= 2 parallel grid steps when cheap to do so (v7x 2-TC megacore).
    if Nb * pl.cdiv(HW, thw) < 2 and HW % 256 == 0 and HW // 2 >= 128:
        thw = HW // 2

    grid = (Nb, pl.cdiv(HW, thw))

    # VMEM footprint: 2x input tile + 2x output tile (double-buffered) + weight.
    block_bytes = 4 * cw_pad * _ceil_to(thw, 128)
    weight_bytes = 4 * cw_pad * max(128, _ceil_to(Cw, 128))
    vmem_limit = int((4 * block_bytes + 2 * weight_bytes) * 1.3) + (1 << 20)
    vmem_limit = max(vmem_limit, 16 << 20)

    z3 = pl.pallas_call(
        _conv1x1_kernel,
        out_shape=jax.ShapeDtypeStruct((Nb, Cw, HW), x_nchw.dtype),
        grid_spec=pltpu.PrefetchScalarGridSpec(
            num_scalar_prefetch=0,
            grid=grid,
            in_specs=[
                # Full weight, constant block index -> fetched once, VMEM-resident.
                pl.BlockSpec((Cw, Cw), lambda n, j: (0, 0)),
                # One folded image, all channels, a lane-dense spatial tile.
                pl.BlockSpec((None, Cw, thw), lambda n, j: (n, 0, j)),
            ],
            out_specs=pl.BlockSpec((None, Cw, thw), lambda n, j: (n, 0, j)),
        ),
        compiler_params=pltpu.CompilerParams(
            dimension_semantics=("parallel", "parallel"),
            vmem_limit_bytes=vmem_limit,
        ),
        cost_estimate=pl.CostEstimate(
            flops=2 * Nb * HW * Cw * Cw,
            transcendentals=0,
            bytes_accessed=2 * N * C * HW * 4 + Cw * Cw * 4,
        ),
    )(w_used, x3)

    return z3.reshape(N, C, H, W)


def make_weight(num_channels, seed=0):
    """Deterministic orthogonal init, mirroring np.linalg.qr(randn(C, C))[0]."""
    key = jax.random.PRNGKey(seed)
    w0 = jax.random.normal(key, (num_channels, num_channels), dtype=jnp.float32)
    q, _ = jnp.linalg.qr(w0)
    return q.astype(jnp.float32)


if __name__ == "__main__":
    N, C, H, W = 2, 4, 16, 16

    key = jax.random.PRNGKey(0)
    kx, _ = jax.random.split(key)
    x = jax.random.normal(kx, (N, C, H, W), dtype=jnp.float32)

    weight = make_weight(C, seed=0)

    # Forward (isRev=False)
    z_fwd = invertible_conv1x1(x, weight, is_rev=False)
    z_fwd = jax.block_until_ready(z_fwd)

    # Reverse (isRev=True) — conv with f64-computed inverse weight
    z_rev = invertible_conv1x1(x, weight, is_rev=True)
    z_rev = jax.block_until_ready(z_rev)

    # Pure-JAX references (1x1 conv == channel matmul)
    w_inv_ref = jnp.asarray(
        np.linalg.inv(np.asarray(weight, dtype=np.float64)).astype(np.float32)
    )
    ref_fwd = jnp.einsum("nchw,oc->nohw", x, weight)
    ref_rev = jnp.einsum("nchw,oc->nohw", x, w_inv_ref)

    assert z_fwd.shape == (N, C, H, W) and z_fwd.dtype == jnp.float32
    assert jnp.allclose(z_fwd, ref_fwd, atol=1e-5, rtol=1e-5)
    assert jnp.allclose(z_rev, ref_rev, atol=1e-5, rtol=1e-5)
    # invertibility sanity: reverse(forward(x)) ~= x
    x_back = invertible_conv1x1(z_fwd, weight, is_rev=True)
    assert jnp.allclose(jax.block_until_ready(x_back), x, atol=1e-4, rtol=1e-4)

    print("KERNEL_OK")
</pallas_src>

<mosaic_0001>
module attributes {stable_mosaic.version = 11 : i64} {
  func.func @_conv1x1_kernel(%arg0: i32, %arg1: i32, %arg2: memref<8x8xf32, #tpu.memory_space<vmem>>, %arg3: memref<1x8x128xf32, #tpu.memory_space<vmem>>, %arg4: memref<1x8x128xf32, #tpu.memory_space<vmem>>) attributes {dimension_semantics = [#tpu.dimension_semantics<parallel>, #tpu.dimension_semantics<parallel>], iteration_bounds = array<i64: 1, 2>, scalar_prefetch = 0 : i64, scratch_operands = 0 : i64, tpu.core_type = #tpu.core_type<tc>, window_params = [{pipeline_mode = #tpu.pipeline_mode<synchronous>, transform_indices = @transform_0, window_bounds = array<i64: 8, 8>}, {transform_indices = @transform_1, window_bounds = array<i64: 1, 8, 128>}, {transform_indices = @transform_2, window_bounds = array<i64: 1, 8, 128>}]} {
    %c0 = arith.constant 0 : index
    %c0_0 = arith.constant 0 : index
    %0 = vector.load %arg2[%c0, %c0_0] : memref<8x8xf32, #tpu.memory_space<vmem>>, vector<8x8xf32>
    %c0_1 = arith.constant 0 : index
    %c0_2 = arith.constant 0 : index
    %c0_3 = arith.constant 0 : index
    %1 = vector.load %arg3[%c0_1, %c0_2, %c0_3] : memref<1x8x128xf32, #tpu.memory_space<vmem>>, vector<1x8x128xf32>
    %2 = vector.shape_cast %1 : vector<1x8x128xf32> to vector<8x128xf32>
    %cst = arith.constant dense<0.000000e+00> : vector<8x128xf32>
    %3 = tpu.matmul %0, %2, %cst {dimension_numbers = #tpu.dot_dimension_numbers<[1], [0], [0], [1], [0, 0, 1, 1], [], []>} : vector<8x8xf32>, vector<8x128xf32>, vector<8x128xf32> -> vector<8x128xf32>
    %c0_4 = arith.constant 0 : index
    %c0_5 = arith.constant 0 : index
    %c0_6 = arith.constant 0 : index
    %4 = vector.load %arg4[%c0_4, %c0_5, %c0_6] : memref<1x8x128xf32, #tpu.memory_space<vmem>>, vector<1x8x128xf32>
    %5 = vector.shape_cast %4 : vector<1x8x128xf32> to vector<8x128xf32>
    %6 = vector.shape_cast %3 : vector<8x128xf32> to vector<1x8x128xf32>
    tpu.vector_store %arg4[%c0_4, %c0_5, %c0_6], %6 {strides = array<i32>} : memref<1x8x128xf32, #tpu.memory_space<vmem>>, vector<1x8x128xf32>,
    return
  }
  func.func @transform_0(%arg0: i32, %arg1: i32) -> (i32, i32) {
    %c0_i32 = arith.constant 0 : i32
    %c0_i32_0 = arith.constant 0 : i32
    %c0_i32_1 = arith.constant 0 : i32
    return %c0_i32, %c0_i32_0 : i32, i32
  }
  func.func @transform_1(%arg0: i32, %arg1: i32) -> (i32, i32, i32) {
    %c0_i32 = arith.constant 0 : i32
    %c0_i32_0 = arith.constant 0 : i32
    return %arg0, %c0_i32, %arg1 : i32, i32, i32
  }
  func.func @transform_2(%arg0: i32, %arg1: i32) -> (i32, i32, i32) {
    %c0_i32 = arith.constant 0 : i32
    %c0_i32_0 = arith.constant 0 : i32
    return %arg0, %c0_i32, %arg1 : i32, i32, i32
  }
}

</mosaic_0001>

<llo_original>
// kernel: tpu_custom_call.1
$region0: #{tpu_custom_call.1}
  #allocation0 [shape = 'u32[]', space=smem, size = 0x4, offset = 0x4, fixed_abs, tag = 'smem constant byte address 0x4 - core index']
  #allocation1 [shape = 'u32[144,128]{1,0:T(1,128)}', space=vmem, size = 0x12000, scoped, tag = 'internal scratch']
  %s0 = inlined_call_operand.hbm [shape: f32[8,8], index: 0, kind: input, shape index: {}]
  %s1 = inlined_call_operand.hbm [shape: f32[1,8,256], index: 1, kind: input, shape index: {}]
  %s2 = inlined_call_operand.hbm [shape: f32[1,8,256], index: 2, kind: output, shape index: {}]
  %s3 = sld [smem:[#allocation0]]
  $region49: #{tpu_custom_call.1} parent=0
    _
  %s5 = ssub.s32 1, %s3
  %s6 = scalar_select 0, %s5, %s3
  $region1: #{tpu_custom_call.1} parent=0
    #allocation2 [shape = 'u8[4096]{0}', space=vmem, size = 0x1000, scoped, tag = 'input window, operand 0, single buffered']
    #allocation3 [shape = 's32[2]{0}', space=sflag, size = 0x8, scoped, tag = 'scoped memory for tpu_custom_call.1']
    #allocation4 [shape = 's32[2]{0}', space=sflag, size = 0x8, scoped, tag = 'scoped memory for tpu_custom_call.1']
    #allocation5 [shape = 'u8[8192]{0}', space=vmem, size = 0x2000, scoped, tag = 'input window, operand 1']
    #allocation6 [shape = 's32[2]{0}', space=sflag, size = 0x8, scoped, tag = 'scoped memory for tpu_custom_call.1']
    #allocation7 [shape = 'u8[8192]{0}', space=vmem, size = 0x2000, scoped, tag = 'output window, operand 0']
    %7 = vsyncpa [#allocation3], 0
    %8 = vsyncpa [#allocation6], 0
    %s9 = scalar_lea.sflag [#allocation6], 1
    %10 = vsyncpa %s9, 0
    %11 = vsyncpa [#allocation4], 0
    %s12 = scalar_lea.sflag [#allocation4], 1
    %13 = vsyncpa %s12, 0
    loop: start=0, step=1, limit=4
    $region2: #{tpu_custom_call.1} parent=1 // loop_pre_header
      _
    $region3: #{tpu_custom_call.1} parent=1 // loop_header
      %s15 = sphi 0, %s19
      %p16 = scmp.ge.s32.totalorder %s15, 4
      %s22 = sphi 0, %s34
      %s23 = sphi 0, %s30
      %s24 = sphi 0, %s22
      %s25 = sphi 0, %s23
      %s26 = sphi 0, %s24
      %s27 = sphi 0, %s25
      %s35 = sphi 0, %s35
      %s37 = sphi 0, %s35
      %s38 = sphi 0, %s37
      %s52 = sphi 0, %s38
      %s60 = sphi 0, %s62
      %s63 = sphi 0, %s60
      %s64 = sphi 0, %s63
      %s80 = sphi 0, %s64
      %s88 = sphi 0, %s90
      %s91 = sphi 0, %s88
      %s92 = sphi 0, %s91
      %s108 = sphi 0, %s92
    $region4: #{tpu_custom_call.1} parent=1 // loop_header_branch
      %18 = sbr.rel (%p16) target = $region8
    $region5: #{tpu_custom_call.1} parent=1 // loop_body
      %s20 = ssub.s32 %s15, 1
      %s21 = ssub.s32 %s15, 2
      %s28 = sadd.s32 1, %s23
      %p29 = scmp.ge.s32.totalorder %s28, 2
      %s30 = scalar_select %p29, 0, %s28
      %s31 = sadd.s32 1, %s22
      %s32 = scalar_select %p29, %s31, %s22
      %p33 = scmp.ge.s32.totalorder %s32, 1
      %s34 = scalar_select %p33, 0, %s32
      %s36 = sadd.s32 %s35, 1
      %p39 = scmp.eq.s32.totalorder %s15, 1
      %p40 = scmp.ne.s32.totalorder %s35, %s37
      %p41 = scmp.eq.s32.totalorder %s15, 0
      %p42 = por %p40, %p41
      %p43 = scmp.ne.s32.totalorder %s35, %s37
      %p44 = scmp.eq.s32.totalorder %s20, 1
      %p45 = por %p43, %p44
      %p46 = scmp.ne.s32.totalorder %s37, %s38
      %p47 = scmp.eq.s32.totalorder %s20, 0
      %p48 = por %p46, %p47
      %p49 = scmp.ne.s32.totalorder %s37, %s38
      %p50 = scmp.eq.s32.totalorder %s21, 1
      %p51 = por %p49, %p50
      %p53 = scmp.ne.s32.totalorder %s38, %s52
      %p54 = scmp.eq.s32.totalorder %s21, 0
      %p55 = por %p53, %p54
      %s56 = ssub.s32 %s22, %s34
      %s57 = ssub.s32 %s23, %s30
      %s58 = sor.u32 %s56, %s57
      %p59 = scmp.eq.s32.totalorder %s58, 0
      %s61 = sadd.s32 %s60, 1
      %s62 = scalar_select %p59, %s60, %s61
      %p65 = pneg %p59
      %p66 = scmp.eq.s32.totalorder %s15, 1
      %p67 = por %p65, %p66
      %p68 = scmp.ne.s32.totalorder %s60, %s63
      %p69 = scmp.eq.s32.totalorder %s15, 0
      %p70 = por %p68, %p69
      %p71 = scmp.ne.s32.totalorder %s60, %s63
      %p72 = scmp.eq.s32.totalorder %s20, 1
      %p73 = por %p71, %p72
      %p74 = scmp.ne.s32.totalorder %s63, %s64
      %p75 = scmp.eq.s32.totalorder %s20, 0
      %p76 = por %p74, %p75
      %p77 = scmp.ne.s32.totalorder %s63, %s64
      %p78 = scmp.eq.s32.totalorder %s21, 1
      %p79 = por %p77, %p78
      %p81 = scmp.ne.s32.totalorder %s64, %s80
      %p82 = scmp.eq.s32.totalorder %s21, 0
      %p83 = por %p81, %p82
      %s84 = ssub.s32 %s22, %s34
      %s85 = ssub.s32 %s23, %s30
      %s86 = sor.u32 %s84, %s85
      %p87 = scmp.eq.s32.totalorder %s86, 0
      %s89 = sadd.s32 %s88, 1
      %s90 = scalar_select %p87, %s88, %s89
      %p93 = pneg %p87
      %p94 = scmp.eq.s32.totalorder %s15, 1
      %p95 = por %p93, %p94
      %p96 = scmp.ne.s32.totalorder %s88, %s91
      %p97 = scmp.eq.s32.totalorder %s15, 0
      %p98 = por %p96, %p97
      %p99 = scmp.ne.s32.totalorder %s88, %s91
      %p100 = scmp.eq.s32.totalorder %s20, 1
      %p101 = por %p99, %p100
      %p102 = scmp.ne.s32.totalorder %s91, %s92
      %p103 = scmp.eq.s32.totalorder %s20, 0
      %p104 = por %p102, %p103
      %p105 = scmp.ne.s32.totalorder %s91, %s92
      %p106 = scmp.eq.s32.totalorder %s21, 1
      %p107 = por %p105, %p106
      %p109 = scmp.ne.s32.totalorder %s92, %s108
      %p110 = scmp.eq.s32.totalorder %s21, 0
      %p111 = por %p109, %p110
      %p112 = scmp.le.s32.totalorder 1, %s15
      %p113 = scmp.lt.s32.totalorder %s15, 3
      %p114 = pnand %p112, %p113
      %p115 = pneg %p114
      // Predicated region
      $region9: #{tpu_custom_call.1} parent=5 // pred_check
        _
      $region10: #{tpu_custom_call.1} parent=5 // pred_check_branch
        %117 = sbr.rel (%p114) target = $region12
      $region11: #{tpu_custom_call.1} parent=5 // pred_region
        %s118 = ssub.s32 %s15, 1
        // Predicated region
        $region13: #{tpu_custom_call.1} parent=11 // pred_check
          %p119 = pneg %p48
        $region14: #{tpu_custom_call.1} parent=11 // pred_check_branch
          %121 = sbr.rel (%p119) target = $region16
        $region15: #{tpu_custom_call.1} parent=11 // pred_region
          %s123 = ssub.s32 128, 128
          %124 = vsyncadd [#allocation3], %s123
          %s126 = sshll.u32 [#allocation2], 4
          %s127 = int_to_ptr.vmem [resolvable:$true] %s126
          %129 = dma.hbm_to_vmem [thread:$0]  %s0, 128, %s127, [#allocation3]
        $region16: #{tpu_custom_call.1} parent=11 // pred_fallthru
          _
      $region12: #{tpu_custom_call.1} parent=5 // pred_fallthru
        _
      %p130 = scmp.lt.s32.totalorder %s15, 2
      // Predicated region
      $region17: #{tpu_custom_call.1} parent=5 // pred_check
        %p131 = pneg %p130
      $region18: #{tpu_custom_call.1} parent=5 // pred_check_branch
        %133 = sbr.rel (%p131) target = $region20
      $region19: #{tpu_custom_call.1} parent=5 // pred_region
        // Predicated region
        $region21: #{tpu_custom_call.1} parent=19 // pred_check
          %p134 = pneg %p70
        $region22: #{tpu_custom_call.1} parent=19 // pred_check_branch
          %136 = sbr.rel (%p134) target = $region24
        $region23: #{tpu_custom_call.1} parent=19 // pred_region
          %s137 = sand.u32 %s60, 1
          %s138 = scalar_lea.sflag [#allocation6], %s137
          %s139 = sand.u32 %s60, 1
          %s140 = smul.addr %s139, 8
          %s141 = scalar_lea.vmem [#allocation5], %s140
          %s143 = ssub.s32 128, 128
          %144 = vsyncadd %s138, %s143
          %s145 = smul.addr %s22, 2
          %s146 = sadd.s32 %s23, %s145
          %s147 = smul.addr %s146, 128
          %s148 = scalar_lea.hbm %s1, %s147
          %s150 = sshll.u32 %s141, 4
          %s151 = int_to_ptr.vmem [resolvable:$true] %s150
          %153 = dma.hbm_to_vmem [thread:$0]  %s148, 128, %s151, %s138
        $region24: #{tpu_custom_call.1} parent=19 // pred_fallthru
          _
      $region20: #{tpu_custom_call.1} parent=5 // pred_fallthru
        _
      %p154 = scmp.le.s32.totalorder 1, %s15
      %p155 = scmp.lt.s32.totalorder %s15, 3
      %p156 = pnand %p154, %p155
      %p157 = pneg %p156
      // Predicated region
      $region25: #{tpu_custom_call.1} parent=5 // pred_check
        _
      $region26: #{tpu_custom_call.1} parent=5 // pred_check_branch
        %159 = sbr.rel (%p156) target = $region28
      $region27: #{tpu_custom_call.1} parent=5 // pred_region
        %s160 = ssub.s32 %s15, 1
        // Predicated region
        $region29: #{tpu_custom_call.1} parent=27 // pred_check
          %p161 = pneg %p48
        $region30: #{tpu_custom_call.1} parent=27 // pred_check_branch
          %163 = sbr.rel (%p161) target = $region32
        $region31: #{tpu_custom_call.1} parent=27 // pred_region
          %164 = dma.done [#allocation3], 128
        $region32: #{tpu_custom_call.1} parent=27 // pred_fallthru
          _
        %s165 = sand.u32 %s63, 1
        %s166 = scalar_lea.sflag [#allocation6], %s165
        %s167 = sand.u32 %s63, 1
        %s168 = smul.addr %s167, 8
        %s169 = scalar_lea.vmem [#allocation5], %s168
        // Predicated region
        $region33: #{tpu_custom_call.1} parent=27 // pred_check
          %p170 = pneg %p76
        $region34: #{tpu_custom_call.1} parent=27 // pred_check_branch
          %172 = sbr.rel (%p170) target = $region36
        $region35: #{tpu_custom_call.1} parent=27 // pred_region
          %173 = dma.done %s166, 128
        $region36: #{tpu_custom_call.1} parent=27 // pred_fallthru
          _
        %p174 = pneg %p48
        %p175 = pneg %p45
        %s176 = sand.u32 %s63, 1
        %s177 = scalar_lea.sflag [#allocation6], %s176
        %s178 = sand.u32 %s63, 1
        %s179 = smul.addr %s178, 8
        %s180 = scalar_lea.vmem [#allocation5], %s179
        %p181 = pneg %p76
        %p182 = pneg %p73
        %p183 = pneg %p104
        %p184 = pneg %p101
        %s185 = sand.u32 %s91, 1
        %s186 = scalar_lea.sflag [#allocation4], %s185
        %s187 = sand.u32 %s91, 1
        %s188 = smul.addr %s187, 8
        %s189 = scalar_lea.vmem [#allocation7], %s188
        %v190 = vld [vmem:[#allocation2] sm:$0xff]
        %v191 = vld [vmem:[%s169] sm:$0xff]
        %vm192 = vcmask 64512
        %v194 = vsel %vm192, %v190, 0
        %196 = vmatprep.subr.mxu0 0.0
        %197 = vmatpush1.msra.mxu0 %v191
        %198 = vmatprep.subr.mxu0 0.0
        %199 = vmatpush1.msra.mxu0 0.0
        %200 = vmatprep.subr.mxu0 0.0
        %201 = vmatpush1.msra.mxu0 0.0
        %202 = vmatprep.subr.mxu0 0.0
        %203 = vmatpush1.msra.mxu0 0.0
        %204 = vmatprep.subr.mxu0 0.0
        %205 = vmatpush1.msra.mxu0 0.0
        %206 = vmatprep.subr.mxu0 0.0
        %207 = vmatpush1.msra.mxu0 0.0
        %208 = vmatprep.subr.mxu0 0.0
        %209 = vmatpush1.msra.mxu0 0.0
        %210 = vmatprep.subr.mxu0 0.0
        %211 = vmatpush1.msra.mxu0 0.0
        %212 = vmatprep.subr.mxu0 0.0
        %213 = vmatpush1.msra.mxu0 0.0
        %214 = vmatprep.subr.mxu0 0.0
        %215 = vmatpush1.msra.mxu0 0.0
        %216 = vmatprep.subr.mxu0 0.0
        %217 = vmatpush1.msra.mxu0 0.0
        %218 = vmatprep.subr.mxu0 0.0
        %219 = vmatpush1.msra.mxu0 0.0
        %220 = vmatprep.subr.mxu0 0.0
        %221 = vmatpush1.msra.mxu0 0.0
        %222 = vmatprep.subr.mxu0 0.0
        %223 = vmatpush1.msra.mxu0 0.0
        %224 = vmatprep.subr.mxu0 0.0
        %225 = vmatpush1.msra.mxu0 0.0
        %226 = vmatprep.subr.mxu0 0.0
        %227 = vmatpush1.msra.mxu0 0.0
        %228 = vmatprep.subr.mxu0 0.0
        %229 = vmatpush1.msra.mxu0 0.0
        %230 = vmatprep.subr.mxu0 0.0
        %231 = vmatpush1.msra.mxu0 0.0
        %232 = vmatprep.subr.mxu0 0.0
        %233 = vmatpush1.msra.mxu0 0.0
        %234 = vmatprep.subr.mxu0 0.0
        %235 = vmatpush1.msra.mxu0 0.0
        %236 = vmatprep.subr.mxu0 0.0
        %237 = vmatpush1.msra.mxu0 0.0
        %238 = vmatprep.subr.mxu0 0.0
        %239 = vmatpush1.msra.mxu0 0.0
        %240 = vmatprep.subr.mxu0 0.0
        %241 = vmatpush1.msra.mxu0 0.0
        %242 = vmatprep.subr.mxu0 0.0
        %243 = vmatpush1.msra.mxu0 0.0
        %244 = vmatprep.subr.mxu0 0.0
        %245 = vmatpush1.msra.mxu0 0.0
        %246 = vmatprep.subr.mxu0 0.0
        %247 = vmatpush1.msra.mxu0 0.0
        %248 = vmatprep.subr.mxu0 0.0
        %249 = vmatpush1.msra.mxu0 0.0
        %250 = vmatprep.subr.mxu0 0.0
        %251 = vmatpush1.msra.mxu0 0.0
        %252 = vmatprep.subr.mxu0 0.0
        %253 = vmatpush1.msra.mxu0 0.0
        %254 = vmatprep.subr.mxu0 0.0
        %255 = vmatpush1.msra.mxu0 0.0
        %256 = vmatprep.subr.mxu0 0.0
        %257 = vmatpush1.msra.mxu0 0.0
        %258 = vmatprep.subr.mxu0 0.0
        %259 = vmatpush1.msra.mxu0 0.0
        %260 = vmatprep.mubr.f32.mxu0 0.0
        %261 = vmatmul.mubr.f32.gmra.mrb[0].mxu0 %v194
        %v262 = vpop.f32.mrb[0].mxu0
        %v263 = vadd.f32 0.0, %v262
        %v264 = vpop.f32.mrb[0].mxu0
        %265 = vdwg.mxu0
        %266 = vst [vmem:[%s189] sm:$0xff] %v263
        %s267 = sand.u32 %s91, 1
        %s268 = scalar_lea.sflag [#allocation4], %s267
        %s269 = sand.u32 %s91, 1
        %s270 = smul.addr %s269, 8
        %s271 = scalar_lea.vmem [#allocation7], %s270
        // Predicated region
        $region37: #{tpu_custom_call.1} parent=27 // pred_check
          %p272 = pneg %p101
        $region38: #{tpu_custom_call.1} parent=27 // pred_check_branch
          %274 = sbr.rel (%p272) target = $region40
        $region39: #{tpu_custom_call.1} parent=27 // pred_region
          %s276 = ssub.s32 128, 128
          %277 = vsyncadd %s268, %s276
          %s278 = smul.addr %s24, 2
          %s279 = sadd.s32 %s25, %s278
          %s280 = smul.addr %s279, 128
          %s281 = scalar_lea.hbm %s2, %s280
          %s283 = sshll.u32 %s271, 4
          %s284 = int_to_ptr.vmem [resolvable:$true] %s283
          %286 = dma.vmem_to_hbm [thread:$0]  %s284, 128, %s281, %s268
        $region40: #{tpu_custom_call.1} parent=27 // pred_fallthru
          _
      $region28: #{tpu_custom_call.1} parent=5 // pred_fallthru
        _
      %p287 = scmp.le.s32.totalorder 2, %s15
      // Predicated region
      $region41: #{tpu_custom_call.1} parent=5 // pred_check
        %p288 = pneg %p287
      $region42: #{tpu_custom_call.1} parent=5 // pred_check_branch
        %290 = sbr.rel (%p288) target = $region44
      $region43: #{tpu_custom_call.1} parent=5 // pred_region
        %s291 = ssub.s32 %s15, 2
        // Predicated region
        $region45: #{tpu_custom_call.1} parent=43 // pred_check
          %p292 = pneg %p107
        $region46: #{tpu_custom_call.1} parent=43 // pred_check_branch
          %294 = sbr.rel (%p292) target = $region48
        $region47: #{tpu_custom_call.1} parent=43 // pred_region
          %s295 = sand.u32 %s92, 1
          %s296 = scalar_lea.sflag [#allocation4], %s295
          %s297 = sand.u32 %s92, 1
          %s298 = smul.addr %s297, 8
          %s299 = scalar_lea.vmem [#allocation7], %s298
          %300 = dma.done %s296, 128
        $region48: #{tpu_custom_call.1} parent=43 // pred_fallthru
          _
      $region44: #{tpu_custom_call.1} parent=5 // pred_fallthru
        _
    $region6: #{tpu_custom_call.1} parent=1 // loop_footer
      %s19 = sadd.s32 1, %s15
    $region7: #{tpu_custom_call.1} parent=1 // loop_footer_branch
      %14 = sbr.rel target = $region3
    $region8: #{tpu_custom_call.1} parent=1 // loop_exit
      _
    %301 = vsyncpa [#allocation3], 1
    %s302 = scalar_lea.sflag [#allocation3], 1
    %303 = vsyncpa %s302, 1
    %304 = vsyncpa [#allocation6], 1
    %s305 = scalar_lea.sflag [#allocation6], 1
    %306 = vsyncpa %s305, 1
    %307 = vsyncpa [#allocation4], 1
    %s308 = scalar_lea.sflag [#allocation4], 1
    %309 = vsyncpa %s308, 1

</llo_original>
